<compile_context>
chip_gen: v7x
topology: tpu7x:2x2x1
jax: 0.10.0
libtpu: 0.0.40
codegen_flags: <defaults>
</compile_context>

<pallas_src>
import functools

import jax
import jax.numpy as jnp
from jax import lax
from jax.experimental import pallas as pl
from jax.experimental.pallas import tpu as pltpu

# ---------------- fake-quant parameters (Qparam, int8 affine) ----------------
QMIN = -128.0
QMAX = 127.0


def _qconv_kernel(qp_ref, xa_ref, xh1_ref, xh2_ref, w_ref, b_ref, o_ref,
                  xq_ref, *, kh, kw, row_tile):
    """Fused fake-quant + single-matmul (implicit im2col) conv for one row tile.

    qp_ref  : SMEM (3,)                  [scale, zero_point, 1/scale]
    xa_ref  : VMEM (1, R, Wp, C)         R padded input rows (f32)
    xh1_ref : VMEM (1, 1, Wp, C)         halo row R   (f32)
    xh2_ref : VMEM (1, 1, Wp, C)         halo row R+1 (f32)
    w_ref   : VMEM (KH*KW*C, OCp)        lane-dense weight matrix (bf16)
    b_ref   : VMEM (1, OCp)              bias (f32, padded)
    o_ref   : VMEM (1, R*OW, OCp)        output tile (f32)
    xq_ref  : VMEM scratch (R+KH-1, Wp, C) bf16 fake-quantized padded rows
    """
    scale = qp_ref[0]
    zp = qp_ref[1]
    inv_scale = qp_ref[2]

    def fq(v):
        # fake_quant: q = clamp(round(x/scale + zp), qmin, qmax); x_fq = (q - zp)*scale
        # (jnp.round is round-half-to-even, matching torch's nearbyint.)
        q = jnp.clip(jnp.round(v * inv_scale + zp), QMIN, QMAX)
        return ((q - zp) * scale).astype(jnp.bfloat16)

    # Assemble the (R + KH - 1) fake-quantized padded rows in VMEM scratch.
    xq_ref[0:row_tile] = fq(xa_ref[0])
    xq_ref[row_tile:row_tile + 1] = fq(xh1_ref[0])
    xq_ref[row_tile + 1:row_tile + 2] = fq(xh2_ref[0])

    x_fq = xq_ref[...]                               # (R+2, Wp, C) bf16
    rp, wp, c = x_fq.shape
    oh_t = rp - kh + 1                               # = R output rows
    ow = wp - kw + 1
    ocp = o_ref.shape[2]

    # Implicit im2col in VMEM: one (R*OW, KH*KW*C) operand, one MXU matmul.
    taps = []
    for i in range(kh):                              # static 3x3 unroll
        for j in range(kw):
            taps.append(x_fq[i:i + oh_t, j:j + ow, :].reshape(oh_t * ow, c))
    cols = jnp.concatenate(taps, axis=-1)            # (R*OW, KH*KW*C) bf16

    acc = jnp.dot(cols, w_ref[...], preferred_element_type=jnp.float32)
    o_ref[0] = (acc + b_ref[0]).astype(o_ref.dtype)


def _choose_row_tile(oh, ow, wp, c, oc_pad, kh, kw, budget_bytes=8 << 20):
    """Largest R dividing OH (with R*OW sublane-friendly) whose per-step
    working set (double-buffered in/out + im2col operand + scratch) fits."""
    smallest_valid = oh
    for r in range(oh, 0, -1):
        if oh % r:
            continue
        if r != oh and (r * ow) % 8 != 0:
            continue
        smallest_valid = r
        in_b = (r + kh - 1) * wp * c * 4              # f32 input rows
        out_b = r * ow * oc_pad * 4                   # f32 output tile
        col_b = r * ow * kh * kw * c * 2              # bf16 im2col operand
        scr_b = (r + kh - 1) * wp * c * 2             # bf16 scratch
        est = 2 * in_b + 2 * out_b + col_b + scr_b
        if est <= budget_bytes:
            return r
    return smallest_valid


@functools.partial(jax.jit, static_argnames=("pad", "row_tile"))
def qconv_forward(x, weight, bias, scale, zero_point, *, pad=1, row_tile=None):
    """x: (N, C, H, W) NCHW; weight: (OC, C, KH, KW); bias: (OC,). Stride 1."""
    n, c, h, w_in = x.shape
    oc, cin, kh, kw = weight.shape
    # Module spec: 3x3, stride 1, padding 1 (halo specs are hard-coded for kh=3).
    assert cin == c and kh == 3 and kw == 3 and pad == 1, (cin, kh, kw, pad)

    hp, wp = h + 2 * pad, w_in + 2 * pad
    oh, ow = hp - kh + 1, wp - kw + 1

    oc_pad = ((oc + 127) // 128) * 128                # lane-dense output

    if row_tile is None:
        row_tile = _choose_row_tile(oh, ow, wp, c, oc_pad, kh, kw)
    assert oh % row_tile == 0, (oh, row_tile)
    assert row_tile == oh or (row_tile * ow) % 8 == 0, (row_tile, ow)
    n_row_tiles = oh // row_tile

    # NCHW -> NHWC and spatial zero-pad (one fused XLA copy over x; the 9x
    # im2col duplication only ever exists in VMEM inside the kernel).
    x_nhwc = jnp.transpose(x, (0, 2, 3, 1))
    xp = jnp.pad(x_nhwc, ((0, 0), (pad, pad), (pad, pad), (0, 0)))

    # (OC, C, KH, KW) -> single lane-dense (KH*KW*C, OC_pad) bf16 matrix.
    w_mat = jnp.transpose(weight, (2, 3, 1, 0)).reshape(kh * kw * c, oc)
    w_mat = jnp.pad(w_mat, ((0, 0), (0, oc_pad - oc))).astype(jnp.bfloat16)
    b_mat = jnp.pad(bias, (0, oc_pad - oc)).reshape(1, oc_pad).astype(jnp.float32)

    # [scale, zero_point, 1/scale] in SMEM -- reciprocal precomputed once.
    qparams = jnp.stack(
        [scale[0], zero_point[0], 1.0 / scale[0]]).astype(jnp.float32)

    kernel = functools.partial(_qconv_kernel, kh=kh, kw=kw, row_tile=row_tile)

    out_flat = pl.pallas_call(
        kernel,
        out_shape=jax.ShapeDtypeStruct((n, oh * ow, oc_pad), jnp.float32),
        grid_spec=pltpu.PrefetchScalarGridSpec(
            num_scalar_prefetch=0,
            grid=(n, n_row_tiles),
            in_specs=[
                # qparams: tiny scalar vector, whole array in SMEM.
                pl.BlockSpec(memory_space=pltpu.MemorySpace.SMEM),
                # R padded rows of image i for row-tile r.
                pl.BlockSpec((1, row_tile, wp, c),
                             lambda i, r: (i, r, 0, 0)),
                # Halo rows r*R+R and r*R+R+1 (block size 1 -> exact row index).
                pl.BlockSpec((1, 1, wp, c),
                             lambda i, r: (i, r * row_tile + row_tile, 0, 0)),
                pl.BlockSpec((1, 1, wp, c),
                             lambda i, r: (i, r * row_tile + row_tile + 1, 0, 0)),
                # Weight / bias: constant index_map -> resident across the grid.
                pl.BlockSpec((kh * kw * c, oc_pad), lambda i, r: (0, 0)),
                pl.BlockSpec((1, oc_pad), lambda i, r: (0, 0)),
            ],
            out_specs=pl.BlockSpec((1, row_tile * ow, oc_pad),
                                   lambda i, r: (i, r, 0)),
            scratch_shapes=[
                pltpu.VMEM((row_tile + kh - 1, wp, c), jnp.bfloat16),
            ],
        ),
        compiler_params=pltpu.CompilerParams(
            dimension_semantics=("parallel", "parallel"),
            vmem_limit_bytes=32 * 1024 * 1024),
    )(qparams, xp, xp, xp, w_mat, b_mat)

    # (N, OH*OW, OCp) -> (N, OH, OW, OC) -> NCHW (module contract).
    # TODO(synk): if the consumer accepts NHWC, return out[..., :oc] directly
    # (and optionally bf16) and skip this transpose (pure layout overhead).
    out = out_flat.reshape(n, oh, ow, oc_pad)[..., :oc]
    return jnp.transpose(out, (0, 3, 1, 2))


def _reference(x, weight, bias, scale, zero_point):
    """Pure-JAX reference: fake_quant (same formula) then lax conv, bf16 operands."""
    s = scale[0]
    zp = zero_point[0]
    inv = 1.0 / s
    q = jnp.clip(jnp.round(x * inv + zp), QMIN, QMAX)
    x_fq = ((q - zp) * s).astype(jnp.bfloat16)
    out = lax.conv_general_dilated(
        x_fq, weight.astype(jnp.bfloat16),
        window_strides=(1, 1), padding=((1, 1), (1, 1)),
        dimension_numbers=("NCHW", "OIHW", "NCHW"),
        preferred_element_type=jnp.float32)
    return out + bias.reshape(1, -1, 1, 1)


if __name__ == "__main__":
    key = jax.random.PRNGKey(0)
    k_x, k_w, k_b = jax.random.split(key, 3)

    N, C, H, W = 2, 4, 16, 16
    OC, KH, KW = 8, 3, 3

    x = jax.random.normal(k_x, (N, C, H, W), dtype=jnp.float32)
    weight = jax.random.normal(k_w, (OC, C, KH, KW), dtype=jnp.float32) * 0.1
    bias = jax.random.normal(k_b, (OC,), dtype=jnp.float32) * 0.1

    # deterministic Qparam (qi) for the input fake-quant; zero_point must be
    # integer-valued for pad-before-fake-quant to be exact (PyTorch zps are ints).
    scale = jnp.array([0.05], dtype=jnp.float32)
    zero_point = jnp.array([0.0], dtype=jnp.float32)

    # row_tile=4 exercises the haloed row-tiling path (4 row tiles per image);
    # the auto-chooser would pick the whole image at this tiny size.
    out = qconv_forward(x, weight, bias, scale, zero_point, pad=1, row_tile=4)
    out = jax.block_until_ready(out)

    ref = _reference(x, weight, bias, scale, zero_point)
    assert out.shape == (N, OC, H, W), out.shape
    err = float(jnp.max(jnp.abs(out - ref)))
    assert err < 2e-3, err

    print("KERNEL_OK")
</pallas_src>

<mosaic_0001>
module attributes {stable_mosaic.version = 11 : i64} {
  func.func @_qconv_kernel(%arg0: i32, %arg1: i32, %arg2: memref<3xf32, #tpu.memory_space<smem>>, %arg3: memref<1x4x18x4xf32, #tpu.memory_space<vmem>>, %arg4: memref<1x1x18x4xf32, #tpu.memory_space<vmem>>, %arg5: memref<1x1x18x4xf32, #tpu.memory_space<vmem>>, %arg6: memref<36x128xbf16, #tpu.memory_space<vmem>>, %arg7: memref<1x128xf32, #tpu.memory_space<vmem>>, %arg8: memref<1x64x128xf32, #tpu.memory_space<vmem>>, %arg9: memref<6x18x4xbf16, #tpu.memory_space<vmem>>) attributes {dimension_semantics = [#tpu.dimension_semantics<parallel>, #tpu.dimension_semantics<parallel>], iteration_bounds = array<i64: 2, 4>, scalar_prefetch = 0 : i64, scratch_operands = 1 : i64, tpu.core_type = #tpu.core_type<tc>, window_params = [{transform_indices = @transform_0, window_bounds = array<i64: 3>}, {transform_indices = @transform_1, window_bounds = array<i64: 1, 4, 18, 4>}, {transform_indices = @transform_2, window_bounds = array<i64: 1, 1, 18, 4>}, {transform_indices = @transform_3, window_bounds = array<i64: 1, 1, 18, 4>}, {pipeline_mode = #tpu.pipeline_mode<synchronous>, transform_indices = @transform_4, window_bounds = array<i64: 36, 128>}, {pipeline_mode = #tpu.pipeline_mode<synchronous>, transform_indices = @transform_5, window_bounds = array<i64: 1, 128>}, {transform_indices = @transform_6, window_bounds = array<i64: 1, 64, 128>}]} {
    %c0 = arith.constant 0 : index
    %0 = memref.load %arg2[%c0] : memref<3xf32, #tpu.memory_space<smem>>
    %c1 = arith.constant 1 : index
    %1 = memref.load %arg2[%c1] : memref<3xf32, #tpu.memory_space<smem>>
    %c2 = arith.constant 2 : index
    %2 = memref.load %arg2[%c2] : memref<3xf32, #tpu.memory_space<smem>>
    %c0_0 = arith.constant 0 : index
    %c0_1 = arith.constant 0 : index
    %c0_2 = arith.constant 0 : index
    %c0_3 = arith.constant 0 : index
    %3 = vector.load %arg3[%c0_0, %c0_1, %c0_2, %c0_3] : memref<1x4x18x4xf32, #tpu.memory_space<vmem>>, vector<1x4x18x4xf32>
    %4 = vector.shape_cast %3 : vector<1x4x18x4xf32> to vector<4x18x4xf32>
    %5 = vector.broadcast %2 : f32 to vector<4x18x4xf32>
    %6 = arith.mulf %4, %5 : vector<4x18x4xf32>
    %7 = vector.broadcast %1 : f32 to vector<4x18x4xf32>
    %8 = arith.addf %6, %7 : vector<4x18x4xf32>
    %9 = math.roundeven %8 : vector<4x18x4xf32>
    %cst = arith.constant -1.280000e+02 : f32
    %cst_4 = arith.constant 1.270000e+02 : f32
    %10 = vector.broadcast %cst : f32 to vector<4x18x4xf32>
    %11 = arith.maximumf %10, %9 : vector<4x18x4xf32>
    %12 = vector.broadcast %cst_4 : f32 to vector<4x18x4xf32>
    %13 = arith.minimumf %12, %11 : vector<4x18x4xf32>
    %14 = vector.broadcast %1 : f32 to vector<4x18x4xf32>
    %15 = arith.subf %13, %14 : vector<4x18x4xf32>
    %16 = vector.broadcast %0 : f32 to vector<4x18x4xf32>
    %17 = arith.mulf %15, %16 : vector<4x18x4xf32>
    %18 = arith.truncf %17 : vector<4x18x4xf32> to vector<4x18x4xbf16>
    %c0_5 = arith.constant 0 : index
    %c0_6 = arith.constant 0 : index
    %c0_7 = arith.constant 0 : index
    %19 = vector.load %arg9[%c0_5, %c0_6, %c0_7] : memref<6x18x4xbf16, #tpu.memory_space<vmem>>, vector<4x18x4xbf16>
    tpu.vector_store %arg9[%c0_5, %c0_6, %c0_7], %18 {strides = array<i32>} : memref<6x18x4xbf16, #tpu.memory_space<vmem>>, vector<4x18x4xbf16>,
    %c0_8 = arith.constant 0 : index
    %c0_9 = arith.constant 0 : index
    %c0_10 = arith.constant 0 : index
    %c0_11 = arith.constant 0 : index
    %20 = vector.load %arg4[%c0_8, %c0_9, %c0_10, %c0_11] : memref<1x1x18x4xf32, #tpu.memory_space<vmem>>, vector<1x1x18x4xf32>
    %21 = vector.shape_cast %20 : vector<1x1x18x4xf32> to vector<1x18x4xf32>
    %22 = vector.broadcast %2 : f32 to vector<1x18x4xf32>
    %23 = arith.mulf %21, %22 : vector<1x18x4xf32>
    %24 = vector.broadcast %1 : f32 to vector<1x18x4xf32>
    %25 = arith.addf %23, %24 : vector<1x18x4xf32>
    %26 = math.roundeven %25 : vector<1x18x4xf32>
    %cst_12 = arith.constant -1.280000e+02 : f32
    %cst_13 = arith.constant 1.270000e+02 : f32
    %27 = vector.broadcast %cst_12 : f32 to vector<1x18x4xf32>
    %28 = arith.maximumf %27, %26 : vector<1x18x4xf32>
    %29 = vector.broadcast %cst_13 : f32 to vector<1x18x4xf32>
    %30 = arith.minimumf %29, %28 : vector<1x18x4xf32>
    %31 = vector.broadcast %1 : f32 to vector<1x18x4xf32>
    %32 = arith.subf %30, %31 : vector<1x18x4xf32>
    %33 = vector.broadcast %0 : f32 to vector<1x18x4xf32>
    %34 = arith.mulf %32, %33 : vector<1x18x4xf32>
    %35 = arith.truncf %34 : vector<1x18x4xf32> to vector<1x18x4xbf16>
    %c4 = arith.constant 4 : index
    %c0_14 = arith.constant 0 : index
    %c0_15 = arith.constant 0 : index
    %36 = vector.load %arg9[%c4, %c0_14, %c0_15] : memref<6x18x4xbf16, #tpu.memory_space<vmem>>, vector<1x18x4xbf16>
    tpu.vector_store %arg9[%c4, %c0_14, %c0_15], %35 {strides = array<i32>} : memref<6x18x4xbf16, #tpu.memory_space<vmem>>, vector<1x18x4xbf16>,
    %c0_16 = arith.constant 0 : index
    %c0_17 = arith.constant 0 : index
    %c0_18 = arith.constant 0 : index
    %c0_19 = arith.constant 0 : index
    %37 = vector.load %arg5[%c0_16, %c0_17, %c0_18, %c0_19] : memref<1x1x18x4xf32, #tpu.memory_space<vmem>>, vector<1x1x18x4xf32>
    %38 = vector.shape_cast %37 : vector<1x1x18x4xf32> to vector<1x18x4xf32>
    %39 = vector.broadcast %2 : f32 to vector<1x18x4xf32>
    %40 = arith.mulf %38, %39 : vector<1x18x4xf32>
    %41 = vector.broadcast %1 : f32 to vector<1x18x4xf32>
    %42 = arith.addf %40, %41 : vector<1x18x4xf32>
    %43 = math.roundeven %42 : vector<1x18x4xf32>
    %cst_20 = arith.constant -1.280000e+02 : f32
    %cst_21 = arith.constant 1.270000e+02 : f32
    %44 = vector.broadcast %cst_20 : f32 to vector<1x18x4xf32>
    %45 = arith.maximumf %44, %43 : vector<1x18x4xf32>
    %46 = vector.broadcast %cst_21 : f32 to vector<1x18x4xf32>
    %47 = arith.minimumf %46, %45 : vector<1x18x4xf32>
    %48 = vector.broadcast %1 : f32 to vector<1x18x4xf32>
    %49 = arith.subf %47, %48 : vector<1x18x4xf32>
    %50 = vector.broadcast %0 : f32 to vector<1x18x4xf32>
    %51 = arith.mulf %49, %50 : vector<1x18x4xf32>
    %52 = arith.truncf %51 : vector<1x18x4xf32> to vector<1x18x4xbf16>
    %c5 = arith.constant 5 : index
    %c0_22 = arith.constant 0 : index
    %c0_23 = arith.constant 0 : index
    %53 = vector.load %arg9[%c5, %c0_22, %c0_23] : memref<6x18x4xbf16, #tpu.memory_space<vmem>>, vector<1x18x4xbf16>
    tpu.vector_store %arg9[%c5, %c0_22, %c0_23], %52 {strides = array<i32>} : memref<6x18x4xbf16, #tpu.memory_space<vmem>>, vector<1x18x4xbf16>,
    %c0_24 = arith.constant 0 : index
    %c0_25 = arith.constant 0 : index
    %c0_26 = arith.constant 0 : index
    %54 = vector.load %arg9[%c0_24, %c0_25, %c0_26] : memref<6x18x4xbf16, #tpu.memory_space<vmem>>, vector<6x18x4xbf16>
    %55 = vector.extract_strided_slice %54 {offsets = [0, 0, 0], sizes = [4, 16, 4], strides = [1, 1, 1]} : vector<6x18x4xbf16> to vector<4x16x4xbf16>
    %56 = vector.shape_cast %55 : vector<4x16x4xbf16> to vector<64x4xbf16>
    %57 = vector.extract_strided_slice %54 {offsets = [0, 1, 0], sizes = [4, 16, 4], strides = [1, 1, 1]} : vector<6x18x4xbf16> to vector<4x16x4xbf16>
    %58 = vector.shape_cast %57 : vector<4x16x4xbf16> to vector<64x4xbf16>
    %59 = vector.extract_strided_slice %54 {offsets = [0, 2, 0], sizes = [4, 16, 4], strides = [1, 1, 1]} : vector<6x18x4xbf16> to vector<4x16x4xbf16>
    %60 = vector.shape_cast %59 : vector<4x16x4xbf16> to vector<64x4xbf16>
    %61 = vector.extract_strided_slice %54 {offsets = [1, 0, 0], sizes = [4, 16, 4], strides = [1, 1, 1]} : vector<6x18x4xbf16> to vector<4x16x4xbf16>
    %62 = vector.shape_cast %61 : vector<4x16x4xbf16> to vector<64x4xbf16>
    %63 = vector.extract_strided_slice %54 {offsets = [1, 1, 0], sizes = [4, 16, 4], strides = [1, 1, 1]} : vector<6x18x4xbf16> to vector<4x16x4xbf16>
    %64 = vector.shape_cast %63 : vector<4x16x4xbf16> to vector<64x4xbf16>
    %65 = vector.extract_strided_slice %54 {offsets = [1, 2, 0], sizes = [4, 16, 4], strides = [1, 1, 1]} : vector<6x18x4xbf16> to vector<4x16x4xbf16>
    %66 = vector.shape_cast %65 : vector<4x16x4xbf16> to vector<64x4xbf16>
    %67 = vector.extract_strided_slice %54 {offsets = [2, 0, 0], sizes = [4, 16, 4], strides = [1, 1, 1]} : vector<6x18x4xbf16> to vector<4x16x4xbf16>
    %68 = vector.shape_cast %67 : vector<4x16x4xbf16> to vector<64x4xbf16>
    %69 = vector.extract_strided_slice %54 {offsets = [2, 1, 0], sizes = [4, 16, 4], strides = [1, 1, 1]} : vector<6x18x4xbf16> to vector<4x16x4xbf16>
    %70 = vector.shape_cast %69 : vector<4x16x4xbf16> to vector<64x4xbf16>
    %71 = vector.extract_strided_slice %54 {offsets = [2, 2, 0], sizes = [4, 16, 4], strides = [1, 1, 1]} : vector<6x18x4xbf16> to vector<4x16x4xbf16>
    %72 = vector.shape_cast %71 : vector<4x16x4xbf16> to vector<64x4xbf16>
    %73 = tpu.concatenate %56, %58, %60, %62, %64, %66, %68, %70, %72 in 1 : vector<64x4xbf16>, vector<64x4xbf16>, vector<64x4xbf16>, vector<64x4xbf16>, vector<64x4xbf16>, vector<64x4xbf16>, vector<64x4xbf16>, vector<64x4xbf16>, vector<64x4xbf16> -> vector<64x36xbf16>
    %c0_27 = arith.constant 0 : index
    %c0_28 = arith.constant 0 : index
    %74 = vector.load %arg6[%c0_27, %c0_28] : memref<36x128xbf16, #tpu.memory_space<vmem>>, vector<36x128xbf16>
    %cst_29 = arith.constant dense<0.000000e+00> : vector<64x128xf32>
    %75 = tpu.matmul %73, %74, %cst_29 {dimension_numbers = #tpu.dot_dimension_numbers<[1], [0], [0], [1], [0, 0, 1, 1], [], []>} : vector<64x36xbf16>, vector<36x128xbf16>, vector<64x128xf32> -> vector<64x128xf32>
    %c0_30 = arith.constant 0 : index
    %c0_31 = arith.constant 0 : index
    %76 = vector.load %arg7[%c0_30, %c0_31] : memref<1x128xf32, #tpu.memory_space<vmem>>, vector<1x128xf32>
    %77 = vector.shape_cast %76 : vector<1x128xf32> to vector<128xf32>
    %78 = vector.shape_cast %77 : vector<128xf32> to vector<1x128xf32>
    %79 = vector.broadcast %78 : vector<1x128xf32> to vector<64x128xf32>
    %80 = arith.addf %75, %79 : vector<64x128xf32>
    %c0_32 = arith.constant 0 : index
    %c0_33 = arith.constant 0 : index
    %c0_34 = arith.constant 0 : index
    %81 = vector.load %arg8[%c0_32, %c0_33, %c0_34] : memref<1x64x128xf32, #tpu.memory_space<vmem>>, vector<1x64x128xf32>
    %82 = vector.shape_cast %81 : vector<1x64x128xf32> to vector<64x128xf32>
    %83 = vector.shape_cast %80 : vector<64x128xf32> to vector<1x64x128xf32>
    tpu.vector_store %arg8[%c0_32, %c0_33, %c0_34], %83 {strides = array<i32>} : memref<1x64x128xf32, #tpu.memory_space<vmem>>, vector<1x64x128xf32>,
    return
  }
  func.func @transform_0(%arg0: i32, %arg1: i32) -> i32 {
    %c0_i32 = arith.constant 0 : i32
    %c0_i32_0 = arith.constant 0 : i32
    return %c0_i32 : i32
  }
  func.func @transform_1(%arg0: i32, %arg1: i32) -> (i32, i32, i32, i32) {
    %c0_i32 = arith.constant 0 : i32
    %c0_i32_0 = arith.constant 0 : i32
    %c0_i32_1 = arith.constant 0 : i32
    return %arg0, %arg1, %c0_i32, %c0_i32_0 : i32, i32, i32, i32
  }
  func.func @transform_2(%arg0: i32, %arg1: i32) -> (i32, i32, i32, i32) {
    %c4_i32 = arith.constant 4 : i32
    %0 = arith.muli %arg1, %c4_i32 : i32
    %c4_i32_0 = arith.constant 4 : i32
    %1 = arith.addi %0, %c4_i32_0 : i32
    %c0_i32 = arith.constant 0 : i32
    %c0_i32_1 = arith.constant 0 : i32
    %c0_i32_2 = arith.constant 0 : i32
    return %arg0, %1, %c0_i32, %c0_i32_1 : i32, i32, i32, i32
  }
  func.func @transform_3(%arg0: i32, %arg1: i32) -> (i32, i32, i32, i32) {
    %c4_i32 = arith.constant 4 : i32
    %0 = arith.muli %arg1, %c4_i32 : i32
    %c4_i32_0 = arith.constant 4 : i32
    %1 = arith.addi %0, %c4_i32_0 : i32
    %c1_i32 = arith.constant 1 : i32
    %2 = arith.addi %1, %c1_i32 : i32
    %c0_i32 = arith.constant 0 : i32
    %c0_i32_1 = arith.constant 0 : i32
    %c0_i32_2 = arith.constant 0 : i32
    return %arg0, %2, %c0_i32, %c0_i32_1 : i32, i32, i32, i32
  }
  func.func @transform_4(%arg0: i32, %arg1: i32) -> (i32, i32) {
    %c0_i32 = arith.constant 0 : i32
    %c0_i32_0 = arith.constant 0 : i32
    %c0_i32_1 = arith.constant 0 : i32
    return %c0_i32, %c0_i32_0 : i32, i32
  }
  func.func @transform_5(%arg0: i32, %arg1: i32) -> (i32, i32) {
    %c0_i32 = arith.constant 0 : i32
    %c0_i32_0 = arith.constant 0 : i32
    %c0_i32_1 = arith.constant 0 : i32
    return %c0_i32, %c0_i32_0 : i32, i32
  }
  func.func @transform_6(%arg0: i32, %arg1: i32) -> (i32, i32, i32) {
    %c0_i32 = arith.constant 0 : i32
    %c0_i32_0 = arith.constant 0 : i32
    return %arg0, %arg1, %c0_i32 : i32, i32, i32
  }
}

</mosaic_0001>

<llo_original>
// kernel: qconv_forward.1
$region0: #{qconv_forward.1}
  #allocation0 [shape = 'u32[]', space=smem, size = 0x4, offset = 0x4, fixed_abs, tag = 'smem constant byte address 0x4 - core index']
  #allocation1 [shape = 'u32[144,128]{1,0:T(1,128)}', space=vmem, size = 0x12000, scoped, tag = 'internal scratch']
  #allocation2 [shape = 'bf16[6,18,4]{2,1,0:T(8,128)(2,1)}', space=vmem, size = 0x9000, scoped, tag = 'scratch operand']
  %s0 = inlined_call_operand.vmem [shape: f32[3], index: 0, kind: input, shape index: {}]
  %s1 = inlined_call_operand.vmem [shape: f32[2,18,18,4], index: 1, kind: input, shape index: {}, may-alias: {1,2,3}]
  %s2 = inlined_call_operand.vmem [shape: f32[2,18,18,4], index: 2, kind: input, shape index: {}, may-alias: {1,2,3}]
  %s3 = inlined_call_operand.vmem [shape: f32[2,18,18,4], index: 3, kind: input, shape index: {}, may-alias: {1,2,3}]
  %s4 = inlined_call_operand.vmem [shape: bf16[36,128], index: 4, kind: input, shape index: {}]
  %s5 = inlined_call_operand.vmem [shape: f32[1,128], index: 5, kind: input, shape index: {}]
  %s6 = inlined_call_operand.vmem [shape: f32[2,256,128], index: 6, kind: output, shape index: {}]
  %s7 = sld [smem:[#allocation0]]
  $region61: #{qconv_forward.1} parent=0
    _
  %s9 = ssub.s32 1, %s7
  %s10 = scalar_select 0, %s9, %s7
  $region1: #{qconv_forward.1} parent=0
    #allocation3 [shape = 'u8[512]{0}', space=smem, size = 0x200, scoped, tag = 'input window, operand 0, single buffered']
    #allocation4 [shape = 's32[2]{0}', space=sflag, size = 0x8, scoped, tag = 'scoped memory for qconv_forward.1']
    %11 = vsyncpa [#allocation4], 0
    loop: start=0, step=1, limit=10
    $region2: #{qconv_forward.1} parent=1 // loop_pre_header
      _
    $region3: #{qconv_forward.1} parent=1 // loop_header
      %s13 = sphi 0, %s17
      %p14 = scmp.ge.s32.totalorder %s13, 10
      %s20 = sphi 0, %s32
      %s21 = sphi 0, %s28
      %s22 = sphi 0, %s20
      %s23 = sphi 0, %s21
      %s24 = sphi 0, %s22
      %s25 = sphi 0, %s23
      %s33 = sphi 0, %s33
      %s35 = sphi 0, %s33
      %s36 = sphi 0, %s35
      %s50 = sphi 0, %s36
      %s58 = sphi 0, %s60
      %s61 = sphi 0, %s58
      %s62 = sphi 0, %s61
      %s78 = sphi 0, %s62
      %s90 = sphi 0, %s92
      %s93 = sphi 0, %s90
      %s94 = sphi 0, %s93
      %s110 = sphi 0, %s94
      %s122 = sphi 0, %s124
      %s125 = sphi 0, %s122
      %s126 = sphi 0, %s125
      %s142 = sphi 0, %s126
      %s146 = sphi 0, %s146
      %s148 = sphi 0, %s146
      %s149 = sphi 0, %s148
      %s163 = sphi 0, %s149
      %s167 = sphi 0, %s167
      %s169 = sphi 0, %s167
      %s170 = sphi 0, %s169
      %s184 = sphi 0, %s170
      %s192 = sphi 0, %s194
      %s195 = sphi 0, %s192
      %s196 = sphi 0, %s195
      %s212 = sphi 0, %s196
    $region4: #{qconv_forward.1} parent=1 // loop_header_branch
      %16 = sbr.rel (%p14) target = $region8
    $region5: #{qconv_forward.1} parent=1 // loop_body
      %s18 = ssub.s32 %s13, 1
      %s19 = ssub.s32 %s13, 2
      %s26 = sadd.s32 1, %s21
      %p27 = scmp.ge.s32.totalorder %s26, 4
      %s28 = scalar_select %p27, 0, %s26
      %s29 = sadd.s32 1, %s20
      %s30 = scalar_select %p27, %s29, %s20
      %p31 = scmp.ge.s32.totalorder %s30, 2
      %s32 = scalar_select %p31, 0, %s30
      %s34 = sadd.s32 %s33, 1
      %p37 = scmp.eq.s32.totalorder %s13, 7
      %p38 = scmp.ne.s32.totalorder %s33, %s35
      %p39 = scmp.eq.s32.totalorder %s13, 0
      %p40 = por %p38, %p39
      %p41 = scmp.ne.s32.totalorder %s33, %s35
      %p42 = scmp.eq.s32.totalorder %s18, 7
      %p43 = por %p41, %p42
      %p44 = scmp.ne.s32.totalorder %s35, %s36
      %p45 = scmp.eq.s32.totalorder %s18, 0
      %p46 = por %p44, %p45
      %p47 = scmp.ne.s32.totalorder %s35, %s36
      %p48 = scmp.eq.s32.totalorder %s19, 7
      %p49 = por %p47, %p48
      %p51 = scmp.ne.s32.totalorder %s36, %s50
      %p52 = scmp.eq.s32.totalorder %s19, 0
      %p53 = por %p51, %p52
      %s54 = ssub.s32 %s20, %s32
      %s55 = ssub.s32 %s21, %s28
      %s56 = sor.u32 %s54, %s55
      %p57 = scmp.eq.s32.totalorder %s56, 0
      %s59 = sadd.s32 %s58, 1
      %s60 = scalar_select %p57, %s58, %s59
      %p63 = pneg %p57
      %p64 = scmp.eq.s32.totalorder %s13, 7
      %p65 = por %p63, %p64
      %p66 = scmp.ne.s32.totalorder %s58, %s61
      %p67 = scmp.eq.s32.totalorder %s13, 0
      %p68 = por %p66, %p67
      %p69 = scmp.ne.s32.totalorder %s58, %s61
      %p70 = scmp.eq.s32.totalorder %s18, 7
      %p71 = por %p69, %p70
      %p72 = scmp.ne.s32.totalorder %s61, %s62
      %p73 = scmp.eq.s32.totalorder %s18, 0
      %p74 = por %p72, %p73
      %p75 = scmp.ne.s32.totalorder %s61, %s62
      %p76 = scmp.eq.s32.totalorder %s19, 7
      %p77 = por %p75, %p76
      %p79 = scmp.ne.s32.totalorder %s62, %s78
      %p80 = scmp.eq.s32.totalorder %s19, 0
      %p81 = por %p79, %p80
      %s82 = smul.u32 %s21, 4
      %s83 = sadd.s32 %s82, 4
      %s84 = smul.u32 %s28, 4
      %s85 = sadd.s32 %s84, 4
      %s86 = ssub.s32 %s20, %s32
      %s87 = ssub.s32 %s83, %s85
      %s88 = sor.u32 %s86, %s87
      %p89 = scmp.eq.s32.totalorder %s88, 0
      %s91 = sadd.s32 %s90, 1
      %s92 = scalar_select %p89, %s90, %s91
      %p95 = pneg %p89
      %p96 = scmp.eq.s32.totalorder %s13, 7
      %p97 = por %p95, %p96
      %p98 = scmp.ne.s32.totalorder %s90, %s93
      %p99 = scmp.eq.s32.totalorder %s13, 0
      %p100 = por %p98, %p99
      %p101 = scmp.ne.s32.totalorder %s90, %s93
      %p102 = scmp.eq.s32.totalorder %s18, 7
      %p103 = por %p101, %p102
      %p104 = scmp.ne.s32.totalorder %s93, %s94
      %p105 = scmp.eq.s32.totalorder %s18, 0
      %p106 = por %p104, %p105
      %p107 = scmp.ne.s32.totalorder %s93, %s94
      %p108 = scmp.eq.s32.totalorder %s19, 7
      %p109 = por %p107, %p108
      %p111 = scmp.ne.s32.totalorder %s94, %s110
      %p112 = scmp.eq.s32.totalorder %s19, 0
      %p113 = por %p111, %p112
      %s114 = smul.u32 %s21, 4
      %s115 = sadd.s32 %s114, 5
      %s116 = smul.u32 %s28, 4
      %s117 = sadd.s32 %s116, 5
      %s118 = ssub.s32 %s20, %s32
      %s119 = ssub.s32 %s115, %s117
      %s120 = sor.u32 %s118, %s119
      %p121 = scmp.eq.s32.totalorder %s120, 0
      %s123 = sadd.s32 %s122, 1
      %s124 = scalar_select %p121, %s122, %s123
      %p127 = pneg %p121
      %p128 = scmp.eq.s32.totalorder %s13, 7
      %p129 = por %p127, %p128
      %p130 = scmp.ne.s32.totalorder %s122, %s125
      %p131 = scmp.eq.s32.totalorder %s13, 0
      %p132 = por %p130, %p131
      %p133 = scmp.ne.s32.totalorder %s122, %s125
      %p134 = scmp.eq.s32.totalorder %s18, 7
      %p135 = por %p133, %p134
      %p136 = scmp.ne.s32.totalorder %s125, %s126
      %p137 = scmp.eq.s32.totalorder %s18, 0
      %p138 = por %p136, %p137
      %p139 = scmp.ne.s32.totalorder %s125, %s126
      %p140 = scmp.eq.s32.totalorder %s19, 7
      %p141 = por %p139, %p140
      %p143 = scmp.ne.s32.totalorder %s126, %s142
      %p144 = scmp.eq.s32.totalorder %s19, 0
      %p145 = por %p143, %p144
      %s147 = sadd.s32 %s146, 1
      %p150 = scmp.eq.s32.totalorder %s13, 7
      %p151 = scmp.ne.s32.totalorder %s146, %s148
      %p152 = scmp.eq.s32.totalorder %s13, 0
      %p153 = por %p151, %p152
      %p154 = scmp.ne.s32.totalorder %s146, %s148
      %p155 = scmp.eq.s32.totalorder %s18, 7
      %p156 = por %p154, %p155
      %p157 = scmp.ne.s32.totalorder %s148, %s149
      %p158 = scmp.eq.s32.totalorder %s18, 0
      %p159 = por %p157, %p158
      %p160 = scmp.ne.s32.totalorder %s148, %s149
      %p161 = scmp.eq.s32.totalorder %s19, 7
      %p162 = por %p160, %p161
      %p164 = scmp.ne.s32.totalorder %s149, %s163
      %p165 = scmp.eq.s32.totalorder %s19, 0
      %p166 = por %p164, %p165
      %s168 = sadd.s32 %s167, 1
      %p171 = scmp.eq.s32.totalorder %s13, 7
      %p172 = scmp.ne.s32.totalorder %s167, %s169
      %p173 = scmp.eq.s32.totalorder %s13, 0
      %p174 = por %p172, %p173
      %p175 = scmp.ne.s32.totalorder %s167, %s169
      %p176 = scmp.eq.s32.totalorder %s18, 7
      %p177 = por %p175, %p176
      %p178 = scmp.ne.s32.totalorder %s169, %s170
      %p179 = scmp.eq.s32.totalorder %s18, 0
      %p180 = por %p178, %p179
      %p181 = scmp.ne.s32.totalorder %s169, %s170
      %p182 = scmp.eq.s32.totalorder %s19, 7
      %p183 = por %p181, %p182
      %p185 = scmp.ne.s32.totalorder %s170, %s184
      %p186 = scmp.eq.s32.totalorder %s19, 0
      %p187 = por %p185, %p186
      %s188 = ssub.s32 %s20, %s32
      %s189 = ssub.s32 %s21, %s28
      %s190 = sor.u32 %s188, %s189
      %p191 = scmp.eq.s32.totalorder %s190, 0
      %s193 = sadd.s32 %s192, 1
      %s194 = scalar_select %p191, %s192, %s193
      %p197 = pneg %p191
      %p198 = scmp.eq.s32.totalorder %s13, 7
      %p199 = por %p197, %p198
      %p200 = scmp.ne.s32.totalorder %s192, %s195
      %p201 = scmp.eq.s32.totalorder %s13, 0
      %p202 = por %p200, %p201
      %p203 = scmp.ne.s32.totalorder %s192, %s195
      %p204 = scmp.eq.s32.totalorder %s18, 7
      %p205 = por %p203, %p204
      %p206 = scmp.ne.s32.totalorder %s195, %s196
      %p207 = scmp.eq.s32.totalorder %s18, 0
      %p208 = por %p206, %p207
      %p209 = scmp.ne.s32.totalorder %s195, %s196
      %p210 = scmp.eq.s32.totalorder %s19, 7
      %p211 = por %p209, %p210
      %p213 = scmp.ne.s32.totalorder %s196, %s212
      %p214 = scmp.eq.s32.totalorder %s19, 0
      %p215 = por %p213, %p214
      %p216 = scmp.le.s32.totalorder 1, %s13
      %p217 = scmp.lt.s32.totalorder %s13, 9
      %p218 = pnand %p216, %p217
      %p219 = pneg %p218
      // Predicated region
      $region9: #{qconv_forward.1} parent=5 // pred_check
        _
      $region10: #{qconv_forward.1} parent=5 // pred_check_branch
        %221 = sbr.rel (%p218) target = $region12
      $region11: #{qconv_forward.1} parent=5 // pred_region
        %s222 = ssub.s32 %s13, 1
        // Predicated region
        $region13: #{qconv_forward.1} parent=11 // pred_check
          %p223 = pneg %p46
        $region14: #{qconv_forward.1} parent=11 // pred_check_branch
          %225 = sbr.rel (%p223) target = $region16
        $region15: #{qconv_forward.1} parent=11 // pred_region
          %s227 = ssub.s32 16, 16
          %228 = vsyncadd [#allocation4], %s227
          %s230 = sshll.u32 %s0, 4
          %s231 = int_to_ptr.vmem [resolvable:$true] %s230
          %233 = dma.vmem_to_smem %s231, 16, [#allocation3], [#allocation4]
        $region16: #{qconv_forward.1} parent=11 // pred_fallthru
          _
        // Predicated region
        $region17: #{qconv_forward.1} parent=11 // pred_check
          %p234 = pneg %p159
        $region18: #{qconv_forward.1} parent=11 // pred_check_branch
          %236 = sbr.rel (%p234) target = $region20
        $region19: #{qconv_forward.1} parent=11 // pred_region
          _
        $region20: #{qconv_forward.1} parent=11 // pred_fallthru
          _
        // Predicated region
        $region21: #{qconv_forward.1} parent=11 // pred_check
          %p237 = pneg %p180
        $region22: #{qconv_forward.1} parent=11 // pred_check_branch
          %239 = sbr.rel (%p237) target = $region24
        $region23: #{qconv_forward.1} parent=11 // pred_region
          _
        $region24: #{qconv_forward.1} parent=11 // pred_fallthru
          _
      $region12: #{qconv_forward.1} parent=5 // pred_fallthru
        _
      %p240 = scmp.lt.s32.totalorder %s13, 8
      // Predicated region
      $region25: #{qconv_forward.1} parent=5 // pred_check
        %p241 = pneg %p240
      $region26: #{qconv_forward.1} parent=5 // pred_check_branch
        %243 = sbr.rel (%p241) target = $region28
      $region27: #{qconv_forward.1} parent=5 // pred_region
        // Predicated region
        $region29: #{qconv_forward.1} parent=27 // pred_check
          %p244 = pneg %p68
        $region30: #{qconv_forward.1} parent=27 // pred_check_branch
          %246 = sbr.rel (%p244) target = $region32
        $region31: #{qconv_forward.1} parent=27 // pred_region
          %s247 = smul.u32 4, %s21
          %s248 = ssub.s32 18, %s247
          %p249 = scmp.lt.s32.totalorder %s248, 4
          %s250 = scalar_select %p249, %s248, 4
          %s251 = smul.u32 128, %s250
          %s252 = smul.u32 %s251, 3
          %p253 = scmp.lt.s32.totalorder %s20, 1
          %s254 = scalar_select %p253, %s20, 1
          %p255 = scmp.lt.s32.totalorder %s247, 17
          %s256 = scalar_select %p255, %s247, 17
          %s257 = smul.addr %s256, 3
          %s258 = smul.addr %s254, 54
          %s259 = sadd.s32 %s257, %s258
          %s260 = smul.addr %s259, 8
          %s261 = scalar_lea.vmem %s1, %s260
          %s262 = smul.u32 4, %s21
          %s263 = ssub.s32 18, %s262
          %p264 = scmp.lt.s32.totalorder %s263, 4
          %s265 = scalar_select %p264, %s263, 4
          %s266 = smul.u32 128, %s265
          %s267 = smul.u32 %s266, 3
        $region32: #{qconv_forward.1} parent=27 // pred_fallthru
          _
        // Predicated region
        $region33: #{qconv_forward.1} parent=27 // pred_check
          %p268 = pneg %p100
        $region34: #{qconv_forward.1} parent=27 // pred_check_branch
          %270 = sbr.rel (%p268) target = $region36
        $region35: #{qconv_forward.1} parent=27 // pred_region
          %s271 = smul.u32 %s21, 4
          %s272 = sadd.s32 %s271, 4
          %p273 = scmp.lt.s32.totalorder %s20, 1
          %s274 = scalar_select %p273, %s20, 1
          %p275 = scmp.lt.s32.totalorder %s272, 17
          %s276 = scalar_select %p275, %s272, 17
          %s277 = smul.addr %s276, 3
          %s278 = smul.addr %s274, 54
          %s279 = sadd.s32 %s277, %s278
          %s280 = smul.addr %s279, 8
          %s281 = scalar_lea.vmem %s2, %s280
          %s282 = smul.u32 %s21, 4
          %s283 = sadd.s32 %s282, 4
        $region36: #{qconv_forward.1} parent=27 // pred_fallthru
          _
        // Predicated region
        $region37: #{qconv_forward.1} parent=27 // pred_check
          %p284 = pneg %p132
        $region38: #{qconv_forward.1} parent=27 // pred_check_branch
          %286 = sbr.rel (%p284) target = $region40
        $region39: #{qconv_forward.1} parent=27 // pred_region
          %s287 = smul.u32 %s21, 4
          %s288 = sadd.s32 %s287, 5
          %p289 = scmp.lt.s32.totalorder %s20, 1
          %s290 = scalar_select %p289, %s20, 1
          %p291 = scmp.lt.s32.totalorder %s288, 17
          %s292 = scalar_select %p291, %s288, 17
          %s293 = smul.addr %s292, 3
          %s294 = smul.addr %s290, 54
          %s295 = sadd.s32 %s293, %s294
          %s296 = smul.addr %s295, 8
          %s297 = scalar_lea.vmem %s3, %s296
          %s298 = smul.u32 %s21, 4
          %s299 = sadd.s32 %s298, 5
        $region40: #{qconv_forward.1} parent=27 // pred_fallthru
          _
      $region28: #{qconv_forward.1} parent=5 // pred_fallthru
        _
      %p300 = scmp.le.s32.totalorder 1, %s13
      %p301 = scmp.lt.s32.totalorder %s13, 9
      %p302 = pnand %p300, %p301
      %p303 = pneg %p302
      // Predicated region
      $region41: #{qconv_forward.1} parent=5 // pred_check
        _
      $region42: #{qconv_forward.1} parent=5 // pred_check_branch
        %305 = sbr.rel (%p302) target = $region44
      $region43: #{qconv_forward.1} parent=5 // pred_region
        %s306 = ssub.s32 %s13, 1
        // Predicated region
        $region45: #{qconv_forward.1} parent=43 // pred_check
          %p307 = pneg %p46
        $region46: #{qconv_forward.1} parent=43 // pred_check_branch
          %309 = sbr.rel (%p307) target = $region48
        $region47: #{qconv_forward.1} parent=43 // pred_region
          %310 = dma.done [#allocation4], 16
        $region48: #{qconv_forward.1} parent=43 // pred_fallthru
          _
        %311 = sfence
        %p312 = pneg %p46
        %p313 = pneg %p43
        %s314 = smul.u32 4, %s23
        %s315 = ssub.s32 18, %s314
        %p316 = scmp.lt.s32.totalorder %s315, 4
        %s317 = scalar_select %p316, %s315, 4
        %s318 = smul.u32 128, %s317
        %s319 = smul.u32 %s318, 3
        %p320 = scmp.lt.s32.totalorder %s22, 1
        %s321 = scalar_select %p320, %s22, 1
        %p322 = scmp.lt.s32.totalorder %s314, 17
        %s323 = scalar_select %p322, %s314, 17
        %s324 = smul.addr %s323, 3
        %s325 = smul.addr %s321, 54
        %s326 = sadd.s32 %s324, %s325
        %s327 = smul.addr %s326, 8
        %s328 = scalar_lea.vmem %s1, %s327
        %p329 = pneg %p74
        %p330 = pneg %p71
        %s331 = smul.u32 %s23, 4
        %s332 = sadd.s32 %s331, 4
        %p333 = scmp.lt.s32.totalorder %s22, 1
        %s334 = scalar_select %p333, %s22, 1
        %p335 = scmp.lt.s32.totalorder %s332, 17
        %s336 = scalar_select %p335, %s332, 17
        %s337 = smul.addr %s336, 3
        %s338 = smul.addr %s334, 54
        %s339 = sadd.s32 %s337, %s338
        %s340 = smul.addr %s339, 8
        %s341 = scalar_lea.vmem %s2, %s340
        %p342 = pneg %p106
        %p343 = pneg %p103
        %s344 = smul.u32 %s23, 4
        %s345 = sadd.s32 %s344, 5
        %p346 = scmp.lt.s32.totalorder %s22, 1
        %s347 = scalar_select %p346, %s22, 1
        %p348 = scmp.lt.s32.totalorder %s345, 17
        %s349 = scalar_select %p348, %s345, 17
        %s350 = smul.addr %s349, 3
        %s351 = smul.addr %s347, 54
        %s352 = sadd.s32 %s350, %s351
        %s353 = smul.addr %s352, 8
        %s354 = scalar_lea.vmem %s3, %s353
        %p355 = pneg %p138
        %p356 = pneg %p135
        %p357 = pneg %p159
        %p358 = pneg %p156
        %p359 = pneg %p180
        %p360 = pneg %p177
        %p361 = pneg %p208
        %p362 = pneg %p205
        %s363 = smul.u32 8, %s23
        %p364 = scmp.lt.s32.totalorder %s22, 1
        %s365 = scalar_select %p364, %s22, 1
        %p366 = scmp.lt.s32.totalorder %s363, 31
        %s367 = scalar_select %p366, %s363, 31
        %s368 = smul.addr %s365, 32
        %s369 = sadd.s32 %s367, %s368
        %s370 = smul.addr %s369, 8
        %s371 = scalar_lea.vmem %s6, %s370
        %s372 = smul.u32 4, %s23
        %s373 = ssub.s32 18, %s372
        %p374 = scmp.lt.s32.totalorder %s373, 4
        %s375 = scalar_select %p374, %s373, 4
        %s376 = smul.u32 128, %s375
        %s377 = smul.u32 %s376, 3
        %p378 = scmp.lt.s32.totalorder %s22, 1
        %s379 = scalar_select %p378, %s22, 1
        %p380 = scmp.lt.s32.totalorder %s372, 17
        %s381 = scalar_select %p380, %s372, 17
        %s382 = smul.addr %s381, 3
        %s383 = smul.addr %s379, 54
        %s384 = sadd.s32 %s382, %s383
        %s385 = smul.addr %s384, 8
        %s386 = scalar_lea.vmem %s1, %s385
        %s387 = smul.u32 4, %s23
        %s388 = ssub.s32 18, %s387
        %p389 = scmp.lt.s32.totalorder %s388, 4
        %s390 = scalar_select %p389, %s388, 4
        %s391 = smul.u32 128, %s390
        %s392 = smul.u32 %s391, 3
        %s393 = smul.u32 %s23, 4
        %s394 = sadd.s32 %s393, 4
        %p395 = scmp.lt.s32.totalorder %s22, 1
        %s396 = scalar_select %p395, %s22, 1
        %p397 = scmp.lt.s32.totalorder %s394, 17
        %s398 = scalar_select %p397, %s394, 17
        %s399 = smul.addr %s398, 3
        %s400 = smul.addr %s396, 54
        %s401 = sadd.s32 %s399, %s400
        %s402 = smul.addr %s401, 8
        %s403 = scalar_lea.vmem %s2, %s402
        %s404 = smul.u32 %s23, 4
        %s405 = sadd.s32 %s404, 4
        %s406 = smul.u32 %s23, 4
        %s407 = sadd.s32 %s406, 5
        %p408 = scmp.lt.s32.totalorder %s22, 1
        %s409 = scalar_select %p408, %s22, 1
        %p410 = scmp.lt.s32.totalorder %s407, 17
        %s411 = scalar_select %p410, %s407, 17
        %s412 = smul.addr %s411, 3
        %s413 = smul.addr %s409, 54
        %s414 = sadd.s32 %s412, %s413
        %s415 = smul.addr %s414, 8
        %s416 = scalar_lea.vmem %s3, %s415
        %s417 = smul.u32 %s23, 4
        %s418 = sadd.s32 %s417, 5
        %s419 = smul.u32 8, %s23
        %p420 = scmp.lt.s32.totalorder %s22, 1
        %s421 = scalar_select %p420, %s22, 1
        %p422 = scmp.lt.s32.totalorder %s419, 31
        %s423 = scalar_select %p422, %s419, 31
        %s424 = smul.addr %s421, 32
        %s425 = sadd.s32 %s423, %s424
        %s426 = smul.addr %s425, 8
        %s427 = scalar_lea.vmem %s6, %s426
        %s428 = smul.u32 8, %s23
        %s430 = sld [smem:[#allocation3]]
        %s431 = sld [smem:[#allocation3 + $0x1]]
        %s432 = sld [smem:[#allocation3 + $0x2]]
        %v433 = vld [vmem:[%s386] sm:$0xff]
        %v434 = vld [vmem:[%s386 + $0x8] sm:$0xff]
        %v435 = vld [vmem:[%s386 + $0x10] sm:$0x3]
        %v436 = vld [vmem:[%s386 + $0x18] sm:$0xff]
        %v437 = vld [vmem:[%s386 + $0x20] sm:$0xff]
        %v438 = vld [vmem:[%s386 + $0x28] sm:$0x3]
        %v439 = vld [vmem:[%s386 + $0x30] sm:$0xff]
        %v440 = vld [vmem:[%s386 + $0x38] sm:$0xff]
        %v441 = vld [vmem:[%s386 + $0x40] sm:$0x3]
        %v442 = vld [vmem:[%s386 + $0x48] sm:$0xff]
        %v443 = vld [vmem:[%s386 + $0x50] sm:$0xff]
        %v444 = vld [vmem:[%s386 + $0x58] sm:$0x3]
        %v445 = vstv %s432
        %v446 = vmul.f32 %v433, %v445
        %v447 = vmul.f32 %v434, %v445
        %v448 = vmul.f32 %v435, %v445
        %v449 = vmul.f32 %v436, %v445
        %v450 = vmul.f32 %v437, %v445
        %v451 = vmul.f32 %v438, %v445
        %v452 = vmul.f32 %v439, %v445
        %v453 = vmul.f32 %v440, %v445
        %v454 = vmul.f32 %v441, %v445
        %v455 = vmul.f32 %v442, %v445
        %v456 = vmul.f32 %v443, %v445
        %v457 = vmul.f32 %v444, %v445
        %v458 = vstv %s431
        %v459 = vadd.f32 %v446, %v458
        %v460 = vadd.f32 %v447, %v458
        %v461 = vadd.f32 %v448, %v458
        %v462 = vadd.f32 %v449, %v458
        %v463 = vadd.f32 %v450, %v458
        %v464 = vadd.f32 %v451, %v458
        %v465 = vadd.f32 %v452, %v458
        %v466 = vadd.f32 %v453, %v458
        %v467 = vadd.f32 %v454, %v458
        %v468 = vadd.f32 %v455, %v458
        %v469 = vadd.f32 %v456, %v458
        %v470 = vadd.f32 %v457, %v458
        %v471 = vround.ne.pseudo %v459
        %v472 = vround.ne.pseudo %v460
        %v473 = vround.ne.pseudo %v461
        %v474 = vround.ne.pseudo %v462
        %v475 = vround.ne.pseudo %v463
        %v476 = vround.ne.pseudo %v464
        %v477 = vround.ne.pseudo %v465
        %v478 = vround.ne.pseudo %v466
        %v479 = vround.ne.pseudo %v467
        %v480 = vround.ne.pseudo %v468
        %v481 = vround.ne.pseudo %v469
        %v482 = vround.ne.pseudo %v470
        %v483 = vmax.f32 %v471, -128.0
        %v484 = vmax.f32 %v472, -128.0
        %v485 = vmax.f32 %v473, -128.0
        %v486 = vmax.f32 %v474, -128.0
        %v487 = vmax.f32 %v475, -128.0
        %v488 = vmax.f32 %v476, -128.0
        %v489 = vmax.f32 %v477, -128.0
        %v490 = vmax.f32 %v478, -128.0
        %v491 = vmax.f32 %v479, -128.0
        %v492 = vmax.f32 %v480, -128.0
        %v493 = vmax.f32 %v481, -128.0
        %v494 = vmax.f32 %v482, -128.0
        %v495 = vmin.f32 %v483, 127.0
        %v496 = vmin.f32 %v484, 127.0
        %v497 = vmin.f32 %v485, 127.0
        %v498 = vmin.f32 %v486, 127.0
        %v499 = vmin.f32 %v487, 127.0
        %v500 = vmin.f32 %v488, 127.0
        %v501 = vmin.f32 %v489, 127.0
        %v502 = vmin.f32 %v490, 127.0
        %v503 = vmin.f32 %v491, 127.0
        %v504 = vmin.f32 %v492, 127.0
        %v505 = vmin.f32 %v493, 127.0
        %v506 = vmin.f32 %v494, 127.0
        %v507 = vsub.f32 %v495, %v458
        %v508 = vsub.f32 %v496, %v458
        %v509 = vsub.f32 %v497, %v458
        %v510 = vsub.f32 %v498, %v458
        %v511 = vsub.f32 %v499, %v458
        %v512 = vsub.f32 %v500, %v458
        %v513 = vsub.f32 %v501, %v458
        %v514 = vsub.f32 %v502, %v458
        %v515 = vsub.f32 %v503, %v458
        %v516 = vsub.f32 %v504, %v458
        %v517 = vsub.f32 %v505, %v458
        %v518 = vsub.f32 %v506, %v458
        %v519 = vstv %s430
        %v520 = vmul.f32 %v507, %v519
        %v521 = vmul.f32 %v508, %v519
        %v522 = vmul.f32 %v509, %v519
        %v523 = vmul.f32 %v510, %v519
        %v524 = vmul.f32 %v511, %v519
        %v525 = vmul.f32 %v512, %v519
        %v526 = vmul.f32 %v513, %v519
        %v527 = vmul.f32 %v514, %v519
        %v528 = vmul.f32 %v515, %v519
        %v529 = vmul.f32 %v516, %v519
        %v530 = vmul.f32 %v517, %v519
        %v531 = vmul.f32 %v518, %v519
        %v532 = vpack.c.bf16 %v521, %v520
        %v533 = vpack.c.bf16 %v522, %v522
        %v534 = vpack.c.bf16 %v524, %v523
        %v535 = vpack.c.bf16 %v525, %v525
        %v536 = vpack.c.bf16 %v527, %v526
        %v537 = vpack.c.bf16 %v528, %v528
        %v538 = vpack.c.bf16 %v530, %v529
        %v539 = vpack.c.bf16 %v531, %v531
        %v548 = vunpack.c.l.b16 %v532
        %v549 = vunpack.c.h.b16 %v532
        %v550 = vunpack.c.l.b16 %v533
        %v551 = vunpack.c.l.b16 %v534
        %v552 = vunpack.c.h.b16 %v534
        %v553 = vunpack.c.l.b16 %v535
        %v554 = vunpack.c.l.b16 %v536
        %v555 = vunpack.c.h.b16 %v536
        %v556 = vunpack.c.l.b16 %v537
        %v557 = vunpack.c.l.b16 %v538
        %v558 = vunpack.c.h.b16 %v538
        %v559 = vunpack.c.l.b16 %v539
        %v560 = vpack.c.b16 %v548, %v548
        %v561 = vpack.c.b16 %v549, %v549
        %v562 = vpack.c.b16 %v550, %v550
        %v563 = vpack.c.b16 %v551, %v551
        %v564 = vpack.c.b16 %v552, %v552
        %v565 = vpack.c.b16 %v553, %v553
        %v566 = vpack.c.b16 %v554, %v554
        %v567 = vpack.c.b16 %v555, %v555
        %v568 = vpack.c.b16 %v556, %v556
        %v569 = vpack.c.b16 %v557, %v557
        %v570 = vpack.c.b16 %v558, %v558
        %v571 = vpack.c.b16 %v559, %v559
        %vm584 = vcmask 27648
        %585 = vst.msk [vmem:[#allocation2] sm:$0xf] %vm584, %v560
        %586 = vst.msk [vmem:[#allocation2 + $0x4] sm:$0xf] %vm584, %v561
        %vm587 = vcmask 24576
        %588 = vst.msk [vmem:[#allocation2 + $0x8] sm:$0x1] %vm587, %v562
        %589 = vst.msk [vmem:[#allocation2 + $0xc] sm:$0xf] %vm584, %v563
        %590 = vst.msk [vmem:[#allocation2 + $0x10] sm:$0xf] %vm584, %v564
        %591 = vst.msk [vmem:[#allocation2 + $0x14] sm:$0x1] %vm587, %v565
        %592 = vst.msk [vmem:[#allocation2 + $0x18] sm:$0xf] %vm584, %v566
        %593 = vst.msk [vmem:[#allocation2 + $0x1c] sm:$0xf] %vm584, %v567
        %594 = vst.msk [vmem:[#allocation2 + $0x20] sm:$0x1] %vm587, %v568
        %595 = vst.msk [vmem:[#allocation2 + $0x24] sm:$0xf] %vm584, %v569
        %596 = vst.msk [vmem:[#allocation2 + $0x28] sm:$0xf] %vm584, %v570
        %597 = vst.msk [vmem:[#allocation2 + $0x2c] sm:$0x1] %vm587, %v571
        %v598 = vld [vmem:[%s403] sm:$0xff]
        %v599 = vld [vmem:[%s403 + $0x8] sm:$0xff]
        %v600 = vld [vmem:[%s403 + $0x10] sm:$0x3]
        %v601 = vmul.f32 %v598, %v445
        %v602 = vmul.f32 %v599, %v445
        %v603 = vmul.f32 %v600, %v445
        %v604 = vadd.f32 %v601, %v458
        %v605 = vadd.f32 %v602, %v458
        %v606 = vadd.f32 %v603, %v458
        %v607 = vround.ne.pseudo %v604
        %v608 = vround.ne.pseudo %v605
        %v609 = vround.ne.pseudo %v606
        %v610 = vmax.f32 %v607, -128.0
        %v611 = vmax.f32 %v608, -128.0
        %v612 = vmax.f32 %v609, -128.0
        %v613 = vmin.f32 %v610, 127.0
        %v614 = vmin.f32 %v611, 127.0
        %v615 = vmin.f32 %v612, 127.0
        %v616 = vsub.f32 %v613, %v458
        %v617 = vsub.f32 %v614, %v458
        %v618 = vsub.f32 %v615, %v458
        %v619 = vmul.f32 %v616, %v519
        %v620 = vmul.f32 %v617, %v519
        %v621 = vmul.f32 %v618, %v519
        %v622 = vpack.c.bf16 %v620, %v619
        %v623 = vpack.c.bf16 %v621, %v621
        %v626 = vunpack.c.l.b16 %v622
        %v627 = vunpack.c.h.b16 %v622
        %v628 = vunpack.c.l.b16 %v623
        %v629 = vpack.c.b16 %v626, %v626
        %v630 = vpack.c.b16 %v627, %v627
        %v631 = vpack.c.b16 %v628, %v628
        %s635 = scalar_lea.vmem [#allocation2], 48
        %636 = vst.msk [vmem:[%s635] sm:$0xf] %vm584, %v629
        %637 = vst.msk [vmem:[%s635 + $0x4] sm:$0xf] %vm584, %v630
        %638 = vst.msk [vmem:[%s635 + $0x8] sm:$0x1] %vm587, %v631
        %v639 = vld [vmem:[%s416] sm:$0xff]
        %v640 = vld [vmem:[%s416 + $0x8] sm:$0xff]
        %v641 = vld [vmem:[%s416 + $0x10] sm:$0x3]
        %v642 = vmul.f32 %v639, %v445
        %v643 = vmul.f32 %v640, %v445
        %v644 = vmul.f32 %v641, %v445
        %v645 = vadd.f32 %v642, %v458
        %v646 = vadd.f32 %v643, %v458
        %v647 = vadd.f32 %v644, %v458
        %v648 = vround.ne.pseudo %v645
        %v649 = vround.ne.pseudo %v646
        %v650 = vround.ne.pseudo %v647
        %v651 = vmax.f32 %v648, -128.0
        %v652 = vmax.f32 %v649, -128.0
        %v653 = vmax.f32 %v650, -128.0
        %v654 = vmin.f32 %v651, 127.0
        %v655 = vmin.f32 %v652, 127.0
        %v656 = vmin.f32 %v653, 127.0
        %v657 = vsub.f32 %v654, %v458
        %v658 = vsub.f32 %v655, %v458
        %v659 = vsub.f32 %v656, %v458
        %v660 = vmul.f32 %v657, %v519
        %v661 = vmul.f32 %v658, %v519
        %v662 = vmul.f32 %v659, %v519
        %v663 = vpack.c.bf16 %v661, %v660
        %v664 = vpack.c.bf16 %v662, %v662
        %v667 = vunpack.c.l.b16 %v663
        %v668 = vunpack.c.h.b16 %v663
        %v669 = vunpack.c.l.b16 %v664
        %v670 = vpack.c.b16 %v667, %v667
        %v671 = vpack.c.b16 %v668, %v668
        %v672 = vpack.c.b16 %v669, %v669
        %s676 = scalar_lea.vmem [#allocation2], 60
        %677 = vst.msk [vmem:[%s676] sm:$0xf] %vm584, %v670
        %678 = vst.msk [vmem:[%s676 + $0x4] sm:$0xf] %vm584, %v671
        %679 = vst.msk [vmem:[%s676 + $0x8] sm:$0x1] %vm587, %v672
        %v680 = vld [vmem:[#allocation2] sm:$0xf]
        %v681 = vld [vmem:[#allocation2 + $0x4] sm:$0xf]
        %v682 = vld [vmem:[#allocation2 + $0x8] sm:$0x1]
        %v683 = vld [vmem:[#allocation2 + $0xc] sm:$0xf]
        %v684 = vld [vmem:[#allocation2 + $0x10] sm:$0xf]
        %v685 = vld [vmem:[#allocation2 + $0x14] sm:$0x1]
        %v686 = vld [vmem:[#allocation2 + $0x18] sm:$0xf]
        %v687 = vld [vmem:[#allocation2 + $0x1c] sm:$0xf]
        %v688 = vld [vmem:[#allocation2 + $0x20] sm:$0x1]
        %v689 = vld [vmem:[#allocation2 + $0x24] sm:$0xf]
        %v690 = vld [vmem:[#allocation2 + $0x28] sm:$0xf]
        %v691 = vld [vmem:[#allocation2 + $0x2c] sm:$0x1]
        %v692 = vld [vmem:[#allocation2 + $0x30] sm:$0xf]
        %v693 = vld [vmem:[#allocation2 + $0x34] sm:$0xf]
        %v694 = vld [vmem:[#allocation2 + $0x38] sm:$0x1]
        %v695 = vld [vmem:[#allocation2 + $0x3c] sm:$0xf]
        %v696 = vld [vmem:[#allocation2 + $0x40] sm:$0xf]
        %v697 = vld [vmem:[#allocation2 + $0x44] sm:$0x1]
        %vm698 = vsmask.f32 3328
        %vm699 = vsmask.f32 7440
        %vm700 = vmor %vm698, %vm699
        %v702 = vshrl.u32 %v680, 16
        %v704 = vrot.slane %v702, 4
        %v705 = vshll.u32 %v680, 16
        %v707 = vrot.slane %v705, 5
        %v708 = vor.u32 %v704, %v707
        %v709 = vrot.slane %v708, 4
        %v711 = vshll.u32 %v681, 16
        %v713 = vrot.slane %v711, 5
        %v714 = vsel %vm700, %v709, %v713
        %v715 = vshrl.u32 %v681, 16
        %v717 = vrot.slane %v715, 4
        %v718 = vor.u32 %v717, %v713
        %v719 = vrot.slane %v718, 4
        %v721 = vshll.u32 %v682, 16
        %v723 = vrot.slane %v721, 5
        %v724 = vsel %vm700, %v719, %v723
        %v726 = vshrl.u32 %v683, 16
        %v728 = vrot.slane %v726, 4
        %v729 = vshll.u32 %v683, 16
        %v731 = vrot.slane %v729, 5
        %v732 = vor.u32 %v728, %v731
        %v733 = vrot.slane %v732, 4
        %v735 = vshll.u32 %v684, 16
        %v737 = vrot.slane %v735, 5
        %v738 = vsel %vm700, %v733, %v737
        %v739 = vshrl.u32 %v684, 16
        %v741 = vrot.slane %v739, 4
        %v742 = vor.u32 %v741, %v737
        %v743 = vrot.slane %v742, 4
        %v745 = vshll.u32 %v685, 16
        %v747 = vrot.slane %v745, 5
        %v748 = vsel %vm700, %v743, %v747
        %v750 = vshrl.u32 %v686, 16
        %v752 = vrot.slane %v750, 4
        %v753 = vshll.u32 %v686, 16
        %v755 = vrot.slane %v753, 5
        %v756 = vor.u32 %v752, %v755
        %v757 = vrot.slane %v756, 4
        %v759 = vshll.u32 %v687, 16
        %v761 = vrot.slane %v759, 5
        %v762 = vsel %vm700, %v757, %v761
        %v763 = vshrl.u32 %v687, 16
        %v765 = vrot.slane %v763, 4
        %v766 = vor.u32 %v765, %v761
        %v767 = vrot.slane %v766, 4
        %v769 = vshll.u32 %v688, 16
        %v771 = vrot.slane %v769, 5
        %v772 = vsel %vm700, %v767, %v771
        %v774 = vshrl.u32 %v689, 16
        %v776 = vrot.slane %v774, 4
        %v777 = vshll.u32 %v689, 16
        %v779 = vrot.slane %v777, 5
        %v780 = vor.u32 %v776, %v779
        %v781 = vrot.slane %v780, 4
        %v783 = vshll.u32 %v690, 16
        %v785 = vrot.slane %v783, 5
        %v786 = vsel %vm700, %v781, %v785
        %v787 = vshrl.u32 %v690, 16
        %v789 = vrot.slane %v787, 4
        %v790 = vor.u32 %v789, %v785
        %v791 = vrot.slane %v790, 4
        %v793 = vshll.u32 %v691, 16
        %v795 = vrot.slane %v793, 5
        %v796 = vsel %vm700, %v791, %v795
        %vm809 = vcmask 1042432
        %vm810 = vcmask 1046532
        %vm811 = vmor %vm809, %vm810
        %v812 = vrot.slane %v680, 5
        %v813 = vrot.slane %v812, 4
        %v814 = vrot.slane %v681, 5
        %v815 = vsel %vm811, %v813, %v814
        %v816 = vrot.slane %v814, 4
        %v817 = vrot.slane %v682, 5
        %v818 = vsel %vm811, %v816, %v817
        %v819 = vrot.slane %v683, 5
        %v820 = vrot.slane %v819, 4
        %v821 = vrot.slane %v684, 5
        %v822 = vsel %vm811, %v820, %v821
        %v823 = vrot.slane %v821, 4
        %v824 = vrot.slane %v685, 5
        %v825 = vsel %vm811, %v823, %v824
        %v826 = vrot.slane %v686, 5
        %v827 = vrot.slane %v826, 4
        %v828 = vrot.slane %v687, 5
        %v829 = vsel %vm811, %v827, %v828
        %v830 = vrot.slane %v828, 4
        %v831 = vrot.slane %v688, 5
        %v832 = vsel %vm811, %v830, %v831
        %v833 = vrot.slane %v689, 5
        %v834 = vrot.slane %v833, 4
        %v835 = vrot.slane %v690, 5
        %v836 = vsel %vm811, %v834, %v835
        %v837 = vrot.slane %v835, 4
        %v838 = vrot.slane %v691, 5
        %v839 = vsel %vm811, %v837, %v838
        %v841 = vshrl.u32 %v692, 16
        %v843 = vrot.slane %v841, 4
        %v844 = vshll.u32 %v692, 16
        %v846 = vrot.slane %v844, 5
        %v847 = vor.u32 %v843, %v846
        %v848 = vrot.slane %v847, 4
        %v850 = vshll.u32 %v693, 16
        %v852 = vrot.slane %v850, 5
        %v853 = vsel %vm700, %v848, %v852
        %v854 = vshrl.u32 %v693, 16
        %v856 = vrot.slane %v854, 4
        %v857 = vor.u32 %v856, %v852
        %v858 = vrot.slane %v857, 4
        %v860 = vshll.u32 %v694, 16
        %v862 = vrot.slane %v860, 5
        %v863 = vsel %vm700, %v858, %v862
        %v867 = vrot.slane %v692, 5
        %v868 = vrot.slane %v867, 4
        %v869 = vrot.slane %v693, 5
        %v870 = vsel %vm811, %v868, %v869
        %v871 = vrot.slane %v869, 4
        %v872 = vrot.slane %v694, 5
        %v873 = vsel %vm811, %v871, %v872
        %v875 = vshrl.u32 %v695, 16
        %v877 = vrot.slane %v875, 4
        %v878 = vshll.u32 %v695, 16
        %v880 = vrot.slane %v878, 5
        %v881 = vor.u32 %v877, %v880
        %v882 = vrot.slane %v881, 4
        %v884 = vshll.u32 %v696, 16
        %v886 = vrot.slane %v884, 5
        %v887 = vsel %vm700, %v882, %v886
        %v888 = vshrl.u32 %v696, 16
        %v890 = vrot.slane %v888, 4
        %v891 = vor.u32 %v890, %v886
        %v892 = vrot.slane %v891, 4
        %v894 = vshll.u32 %v697, 16
        %v896 = vrot.slane %v894, 5
        %v897 = vsel %vm700, %v892, %v896
        %v901 = vrot.slane %v695, 5
        %v902 = vrot.slane %v901, 4
        %v903 = vrot.slane %v696, 5
        %v904 = vsel %vm811, %v902, %v903
        %v905 = vrot.slane %v903, 4
        %v906 = vrot.slane %v697, 5
        %v907 = vsel %vm811, %v905, %v906
        %v908 = vunpack.c.l.b16 %v680
        %v909 = vunpack.c.l.b16 %v681
        %v910 = vunpack.c.l.b16 %v683
        %v911 = vunpack.c.l.b16 %v684
        %v912 = vunpack.c.l.b16 %v686
        %v913 = vunpack.c.l.b16 %v687
        %v914 = vunpack.c.l.b16 %v689
        %v915 = vunpack.c.l.b16 %v690
        %v916 = vpack.c.b16 %v909, %v908
        %v917 = vpack.c.b16 %v911, %v910
        %v918 = vpack.c.b16 %v913, %v912
        %v919 = vpack.c.b16 %v915, %v914
        %v920 = vunpack.c.l.b16 %v714
        %v921 = vunpack.c.l.b16 %v724
        %v922 = vunpack.c.l.b16 %v738
        %v923 = vunpack.c.l.b16 %v748
        %v924 = vunpack.c.l.b16 %v762
        %v925 = vunpack.c.l.b16 %v772
        %v926 = vunpack.c.l.b16 %v786
        %v927 = vunpack.c.l.b16 %v796
        %v928 = vpack.c.b16 %v921, %v920
        %v929 = vpack.c.b16 %v923, %v922
        %v930 = vpack.c.b16 %v925, %v924
        %v931 = vpack.c.b16 %v927, %v926
        %932 = vrot.lane.b32.xlu0 %v928, 4
        %v933 = vpop.permute.xlu0 %932
        %934 = vrot.lane.b32.xlu0 %v929, 4
        %v935 = vpop.permute.xlu0 %934
        %936 = vrot.lane.b32.xlu0 %v930, 4
        %v937 = vpop.permute.xlu0 %936
        %938 = vrot.lane.b32.xlu0 %v931, 4
        %v939 = vpop.permute.xlu0 %938
        %v940 = vunpack.c.l.b16 %v815
        %v941 = vunpack.c.l.b16 %v818
        %v942 = vunpack.c.l.b16 %v822
        %v943 = vunpack.c.l.b16 %v825
        %v944 = vunpack.c.l.b16 %v829
        %v945 = vunpack.c.l.b16 %v832
        %v946 = vunpack.c.l.b16 %v836
        %v947 = vunpack.c.l.b16 %v839
        %v948 = vpack.c.b16 %v941, %v940
        %v949 = vpack.c.b16 %v943, %v942
        %v950 = vpack.c.b16 %v945, %v944
        %v951 = vpack.c.b16 %v947, %v946
        %952 = vrot.lane.b32.xlu0 %v948, 8
        %v953 = vpop.permute.xlu0 %952
        %954 = vrot.lane.b32.xlu0 %v949, 8
        %v955 = vpop.permute.xlu0 %954
        %956 = vrot.lane.b32.xlu0 %v950, 8
        %v957 = vpop.permute.xlu0 %956
        %958 = vrot.lane.b32.xlu0 %v951, 8
        %v959 = vpop.permute.xlu0 %958
        %v960 = vunpack.c.l.b16 %v692
        %v961 = vunpack.c.l.b16 %v693
        %v962 = vpack.c.b16 %v961, %v960
        %963 = vrot.lane.b32.xlu0 %v917, 12
        %v964 = vpop.permute.xlu0 %963
        %965 = vrot.lane.b32.xlu0 %v918, 12
        %v966 = vpop.permute.xlu0 %965
        %967 = vrot.lane.b32.xlu0 %v919, 12
        %v968 = vpop.permute.xlu0 %967
        %969 = vrot.lane.b32.xlu0 %v962, 12
        %v970 = vpop.permute.xlu0 %969
        %v971 = vunpack.c.l.b16 %v853
        %v972 = vunpack.c.l.b16 %v863
        %v973 = vpack.c.b16 %v972, %v971
        %974 = vrot.lane.b32.xlu0 %v929, 16
        %v975 = vpop.permute.xlu0 %974
        %976 = vrot.lane.b32.xlu0 %v930, 16
        %v977 = vpop.permute.xlu0 %976
        %978 = vrot.lane.b32.xlu0 %v931, 16
        %v979 = vpop.permute.xlu0 %978
        %980 = vrot.lane.b32.xlu0 %v973, 16
        %v981 = vpop.permute.xlu0 %980
        %v982 = vunpack.c.l.b16 %v870
        %v983 = vunpack.c.l.b16 %v873
        %v984 = vpack.c.b16 %v983, %v982
        %985 = vrot.lane.b32.xlu0 %v949, 20
        %v986 = vpop.permute.xlu0 %985
        %987 = vrot.lane.b32.xlu0 %v950, 20
        %v988 = vpop.permute.xlu0 %987
        %989 = vrot.lane.b32.xlu0 %v951, 20
        %v990 = vpop.permute.xlu0 %989
        %991 = vrot.lane.b32.xlu0 %v984, 20
        %v992 = vpop.permute.xlu0 %991
        %v993 = vunpack.c.l.b16 %v695
        %v994 = vunpack.c.l.b16 %v696
        %v995 = vpack.c.b16 %v994, %v993
        %996 = vrot.lane.b32.xlu0 %v918, 24
        %v997 = vpop.permute.xlu0 %996
        %998 = vrot.lane.b32.xlu0 %v919, 24
        %v999 = vpop.permute.xlu0 %998
        %1000 = vrot.lane.b32.xlu0 %v962, 24
        %v1001 = vpop.permute.xlu0 %1000
        %1002 = vrot.lane.b32.xlu0 %v995, 24
        %v1003 = vpop.permute.xlu0 %1002
        %v1004 = vunpack.c.l.b16 %v887
        %v1005 = vunpack.c.l.b16 %v897
        %v1006 = vpack.c.b16 %v1005, %v1004
        %1007 = vrot.lane.b32.xlu0 %v930, 28
        %v1008 = vpop.permute.xlu0 %1007
        %1009 = vrot.lane.b32.xlu0 %v931, 28
        %v1010 = vpop.permute.xlu0 %1009
        %1011 = vrot.lane.b32.xlu0 %v973, 28
        %v1012 = vpop.permute.xlu0 %1011
        %1013 = vrot.lane.b32.xlu0 %v1006, 28
        %v1014 = vpop.permute.xlu0 %1013
        %v1015 = vunpack.c.l.b16 %v904
        %v1016 = vunpack.c.l.b16 %v907
        %v1017 = vpack.c.b16 %v1016, %v1015
        %1018 = vrot.lane.b32.xlu0 %v950, 32
        %v1019 = vpop.permute.xlu0 %1018
        %1020 = vrot.lane.b32.xlu0 %v951, 32
        %v1021 = vpop.permute.xlu0 %1020
        %1022 = vrot.lane.b32.xlu0 %v984, 32
        %v1023 = vpop.permute.xlu0 %1022
        %1024 = vrot.lane.b32.xlu0 %v1017, 32
        %v1025 = vpop.permute.xlu0 %1024
        %vm1026 = vcmask 31744
        %v1029 = vsel %vm1026, %v916, %v933
        %v1032 = vsel %vm1026, %v917, %v935
        %v1035 = vsel %vm1026, %v918, %v937
        %v1038 = vsel %vm1026, %v919, %v939
        %vm1039 = vcmask 64512
        %v1041 = vsel %vm1039, %v1029, %v953
        %v1043 = vsel %vm1039, %v1032, %v955
        %v1045 = vsel %vm1039, %v1035, %v957
        %v1047 = vsel %vm1039, %v1038, %v959
        %vm1048 = vcmask 97280
        %v1050 = vsel %vm1048, %v1041, %v964
        %v1052 = vsel %vm1048, %v1043, %v966
        %v1054 = vsel %vm1048, %v1045, %v968
        %v1056 = vsel %vm1048, %v1047, %v970
        %vm1057 = vcmask 130048
        %v1059 = vsel %vm1057, %v1050, %v975
        %v1061 = vsel %vm1057, %v1052, %v977
        %v1063 = vsel %vm1057, %v1054, %v979
        %v1065 = vsel %vm1057, %v1056, %v981
        %vm1066 = vcmask 162816
        %v1068 = vsel %vm1066, %v1059, %v986
        %v1070 = vsel %vm1066, %v1061, %v988
        %v1072 = vsel %vm1066, %v1063, %v990
        %v1074 = vsel %vm1066, %v1065, %v992
        %vm1075 = vcmask 195584
        %v1077 = vsel %vm1075, %v1068, %v997
        %v1079 = vsel %vm1075, %v1070, %v999
        %v1081 = vsel %vm1075, %v1072, %v1001
        %v1083 = vsel %vm1075, %v1074, %v1003
        %vm1084 = vcmask 228352
        %v1086 = vsel %vm1084, %v1077, %v1008
        %v1088 = vsel %vm1084, %v1079, %v1010
        %v1090 = vsel %vm1084, %v1081, %v1012
        %v1092 = vsel %vm1084, %v1083, %v1014
        %vm1093 = vcmask 261120
        %v1095 = vsel %vm1093, %v1086, %v1019
        %v1097 = vsel %vm1093, %v1088, %v1021
        %v1099 = vsel %vm1093, %v1090, %v1023
        %v1101 = vsel %vm1093, %v1092, %v1025
        %v1102 = vld [vmem:[%s4] sm:$0xf]
        %v1103 = vld [vmem:[%s4 + $0x4] sm:$0xf]
        %v1104 = vld [vmem:[%s4 + $0x8] sm:$0xf]
        %v1105 = vld [vmem:[%s4 + $0xc] sm:$0xf]
        %v1106 = vld [vmem:[%s4 + $0x10] sm:$0x3]
        %v1107 = vld [vmem:[%s5] sm:$0x1]
        %v1109 = vlaneseq
        %v1110 = vshrl.u32 %v1109, 7
        %v1111 = vsub.s32 0, %v1110
        %v1112 = vrot.slane %v1107, %v1111
        %v1119 = vunpack.c.l.b16 %v1102
        %v1120 = vunpack.c.l.b16 %v1103
        %v1121 = vunpack.c.l.b16 %v1104
        %v1122 = vunpack.c.l.b16 %v1105
        %v1123 = vunpack.c.l.b16 %v1106
        %v1124 = vpack.c.b16 %v1120, %v1119
        %v1125 = vpack.c.b16 %v1122, %v1121
        %v1126 = vpack.c.b16 %v1123, %v1123
        %vm1129 = vcmask 293888
        %v1130 = vsel %vm1129, %v1095, 0
        %v1132 = vsel %vm1129, %v1097, 0
        %v1134 = vsel %vm1129, %v1099, 0
        %v1136 = vsel %vm1129, %v1101, 0
        %vm1138 = vcmask 1041408
        %v1140 = vsel %vm1138, %v1126, 0
        %1142 = vmatprep.subr.bf16.mxu0 0
        %1143 = vmatpush1.bf16.msra.mxu0 %v1124
        %1144 = vmatprep.subr.bf16.mxu0 0
        %1145 = vmatpush1.bf16.msra.mxu0 %v1125
        %1146 = vmatprep.subr.bf16.mxu0 0
        %1147 = vmatpush1.bf16.msra.mxu0 %v1140
        %1148 = vmatprep.subr.bf16.mxu0 0
        %1149 = vmatpush1.bf16.msra.mxu0 0
        %1150 = vmatprep.subr.bf16.mxu0 0
        %1151 = vmatpush1.bf16.msra.mxu0 0
        %1152 = vmatprep.subr.bf16.mxu0 0
        %1153 = vmatpush1.bf16.msra.mxu0 0
        %1154 = vmatprep.subr.bf16.mxu0 0
        %1155 = vmatpush1.bf16.msra.mxu0 0
        %1156 = vmatprep.subr.bf16.mxu0 0
        %1157 = vmatpush1.bf16.msra.mxu0 0
        %1158 = vmatprep.subr.bf16.mxu0 0
        %1159 = vmatpush1.bf16.msra.mxu0 0
        %1160 = vmatprep.subr.bf16.mxu0 0
        %1161 = vmatpush1.bf16.msra.mxu0 0
        %1162 = vmatprep.subr.bf16.mxu0 0
        %1163 = vmatpush1.bf16.msra.mxu0 0
        %1164 = vmatprep.subr.bf16.mxu0 0
        %1165 = vmatpush1.bf16.msra.mxu0 0
        %1166 = vmatprep.subr.bf16.mxu0 0
        %1167 = vmatpush1.bf16.msra.mxu0 0
        %1168 = vmatprep.subr.bf16.mxu0 0
        %1169 = vmatpush1.bf16.msra.mxu0 0
        %1170 = vmatprep.subr.bf16.mxu0 0
        %1171 = vmatpush1.bf16.msra.mxu0 0
        %1172 = vmatprep.subr.bf16.mxu0 0
        %1173 = vmatpush1.bf16.msra.mxu0 0
        %1174 = vmatprep.mubr.bf16.mxu0 0
        %1175 = vmatmul.mubr.bf16.gmra.mrb[0].mxu0 %v1130
        %v1176 = vpop.f32.mrb[0].mxu0
        %v1177 = vadd.f32 %v1112, %v1176
        %v1178 = vpop.f32.mrb[0].mxu0
        %v1179 = vpop.f32.mrb[0].mxu0
        %v1180 = vadd.f32 %v1112, %v1179
        %v1181 = vpop.f32.mrb[0].mxu0
        %1182 = vmatprep.mubr.bf16.mxu0 0
        %1183 = vmatmul.mubr.bf16.gmra.mrb[0].mxu0 %v1132
        %v1184 = vpop.f32.mrb[0].mxu0
        %v1185 = vadd.f32 %v1112, %v1184
        %v1186 = vpop.f32.mrb[0].mxu0
        %v1187 = vpop.f32.mrb[0].mxu0
        %v1188 = vadd.f32 %v1112, %v1187
        %v1189 = vpop.f32.mrb[0].mxu0
        %1190 = vmatprep.mubr.bf16.mxu0 0
        %1191 = vmatmul.mubr.bf16.gmra.mrb[0].mxu0 %v1134
        %v1192 = vpop.f32.mrb[0].mxu0
        %v1193 = vadd.f32 %v1112, %v1192
        %v1194 = vpop.f32.mrb[0].mxu0
        %v1195 = vpop.f32.mrb[0].mxu0
        %v1196 = vadd.f32 %v1112, %v1195
        %v1197 = vpop.f32.mrb[0].mxu0
        %1198 = vmatprep.mubr.bf16.mxu0 0
        %1199 = vmatmul.mubr.bf16.gmra.mrb[0].mxu0 %v1136
        %v1200 = vpop.f32.mrb[0].mxu0
        %v1201 = vadd.f32 %v1112, %v1200
        %v1202 = vpop.f32.mrb[0].mxu0
        %v1203 = vpop.f32.mrb[0].mxu0
        %v1204 = vadd.f32 %v1112, %v1203
        %v1205 = vpop.f32.mrb[0].mxu0
        %1206 = vdwg.mxu0
        %1207 = vst [vmem:[%s427] sm:$0xff] %v1177
        %1208 = vst [vmem:[%s427 + $0x8] sm:$0xff] %v1180
        %1209 = vst [vmem:[%s427 + $0x10] sm:$0xff] %v1185
        %1210 = vst [vmem:[%s427 + $0x18] sm:$0xff] %v1188
        %1211 = vst [vmem:[%s427 + $0x20] sm:$0xff] %v1193
        %1212 = vst [vmem:[%s427 + $0x28] sm:$0xff] %v1196
        %1213 = vst [vmem:[%s427 + $0x30] sm:$0xff] %v1201
        %1214 = vst [vmem:[%s427 + $0x38] sm:$0xff] %v1204
        %s1215 = smul.u32 8, %s23
        %p1216 = scmp.lt.s32.totalorder %s22, 1
        %s1217 = scalar_select %p1216, %s22, 1
        %p1218 = scmp.lt.s32.totalorder %s1215, 31
        %s1219 = scalar_select %p1218, %s1215, 31
        %s1220 = smul.addr %s1217, 32
        %s1221 = sadd.s32 %s1219, %s1220
        %s1222 = smul.addr %s1221, 8
        %s1223 = scalar_lea.vmem %s6, %s1222
        // Predicated region
        $region49: #{qconv_forward.1} parent=43 // pred_check
          %p1224 = pneg %p205
        $region50: #{qconv_forward.1} parent=43 // pred_check_branch
          %1226 = sbr.rel (%p1224) target = $region52
        $region51: #{qconv_forward.1} parent=43 // pred_region
          %s1227 = smul.u32 8, %s23
        $region52: #{qconv_forward.1} parent=43 // pred_fallthru
          _
      $region44: #{qconv_forward.1} parent=5 // pred_fallthru
        _
      %p1228 = scmp.le.s32.totalorder 2, %s13
      // Predicated region
      $region53: #{qconv_forward.1} parent=5 // pred_check
        %p1229 = pneg %p1228
      $region54: #{qconv_forward.1} parent=5 // pred_check_branch
        %1231 = sbr.rel (%p1229) target = $region56
      $region55: #{qconv_forward.1} parent=5 // pred_region
        %s1232 = ssub.s32 %s13, 2
        // Predicated region
        $region57: #{qconv_forward.1} parent=55 // pred_check
          %p1233 = pneg %p211
        $region58: #{qconv_forward.1} parent=55 // pred_check_branch
          %1235 = sbr.rel (%p1233) target = $region60
        $region59: #{qconv_forward.1} parent=55 // pred_region
          %s1236 = smul.u32 8, %s25
          %p1237 = scmp.lt.s32.totalorder %s24, 1
          %s1238 = scalar_select %p1237, %s24, 1
          %p1239 = scmp.lt.s32.totalorder %s1236, 31
          %s1240 = scalar_select %p1239, %s1236, 31
          %s1241 = smul.addr %s1238, 32
          %s1242 = sadd.s32 %s1240, %s1241
          %s1243 = smul.addr %s1242, 8
          %s1244 = scalar_lea.vmem %s6, %s1243
        $region60: #{qconv_forward.1} parent=55 // pred_fallthru
          _
      $region56: #{qconv_forward.1} parent=5 // pred_fallthru
        _
    $region6: #{qconv_forward.1} parent=1 // loop_footer
      %s17 = sadd.s32 1, %s13
    $region7: #{qconv_forward.1} parent=1 // loop_footer_branch
      %12 = sbr.rel target = $region3
    $region8: #{qconv_forward.1} parent=1 // loop_exit
      _
    %1245 = vsyncpa [#allocation4], 1
    %s1246 = scalar_lea.sflag [#allocation4], 1
    %1247 = vsyncpa %s1246, 1

</llo_original>
